<compile_context>
chip_gen: v6e
topology: v6e:2x2x1
jax: 0.10.0
libtpu: 0.0.40
codegen_flags: <defaults>
</compile_context>

<pallas_src>
import functools

import jax
import jax.numpy as jnp
from jax.experimental import pallas as pl
from jax.experimental.pallas import tpu as pltpu


def _normalizer_kernel(scale_ref, bias_ref, x_ref, o_ref, *, n_channels, use_clamp):
    # scale_ref / bias_ref: SMEM (C,) f32.  x_ref / o_ref blocks: (NB, C, R, L).
    for c in range(n_channels):                 # static unroll, C is tiny (e.g. 3)
        x = x_ref[:, c].astype(jnp.float32)
        if use_clamp:
            # forward of _straightThroughClamp == torch.clamp(x, 0, 1)
            x = jnp.clip(x, 0.0, 1.0)
        o_ref[:, c] = x * scale_ref[c] + bias_ref[c]


def _tpu_vmem_capacity_bytes():
    try:
        return int(pltpu.get_tpu_info().vmem_capacity_bytes)
    except Exception:
        # Conservative fallback = v7x per-TensorCore VMEM.
        return 64 * 1024 * 1024


def imagenet_normalize(x, mean, std, use_clamp_value):
    """x: (N, C, H, W).  mean/std: (C,).  Returns f32 (N, C, H, W)."""
    N, C, H, W = x.shape
    mean = jnp.asarray(mean, jnp.float32)
    scale = 1.0 / jnp.asarray(std, jnp.float32)   # 1/std
    bias = -mean * scale                          # -mean/std

    # Lane-dense spatial layout.
    P = H * W
    if P % 128 == 0:
        R, L = P // 128, 128
    else:
        # Whole plane in the lane dim: only the last partial vreg is masked.
        R, L = 1, P
    x_r = x.reshape(N, C, R, L)

    # Per-generation VMEM budget (v7x: 64 MiB/TC, v5e/v6e: 128 MiB).
    phys_vmem = _tpu_vmem_capacity_bytes()
    vmem_limit = min(phys_vmem * 3 // 4, 96 * 1024 * 1024)

    in_itemsize = x.dtype.itemsize
    # Double-buffered input + double-buffered f32 output, per image:
    per_image_bytes = 2 * C * P * (in_itemsize + 4)
    budget = vmem_limit - 4 * 1024 * 1024         # headroom for compiler scratch
    NB = max(1, min(N, budget // per_image_bytes))
    if N >= 2:
        # Keep >= 2 grid steps so v7x's 2 TensorCores both get work.
        NB = min(NB, pl.cdiv(N, 2))

    grid = (pl.cdiv(N, NB),)
    kernel = functools.partial(
        _normalizer_kernel, n_channels=C, use_clamp=bool(use_clamp_value)
    )

    out = pl.pallas_call(
        kernel,
        out_shape=jax.ShapeDtypeStruct((N, C, R, L), jnp.float32),
        grid_spec=pltpu.PrefetchScalarGridSpec(
            num_scalar_prefetch=0,
            grid=grid,
            in_specs=[
                pl.BlockSpec(memory_space=pltpu.MemorySpace.SMEM),  # scale (C,)
                pl.BlockSpec(memory_space=pltpu.MemorySpace.SMEM),  # bias  (C,)
                pl.BlockSpec((NB, C, R, L), lambda n: (n, 0, 0, 0)),
            ],
            out_specs=pl.BlockSpec((NB, C, R, L), lambda n: (n, 0, 0, 0)),
        ),
        compiler_params=pltpu.CompilerParams(
            dimension_semantics=("parallel",),
            vmem_limit_bytes=int(vmem_limit),
        ),
        cost_estimate=pl.CostEstimate(
            flops=4 * N * C * P,
            bytes_accessed=(in_itemsize + 4) * N * C * P,
            transcendentals=0,
        ),
    )(scale, bias, x_r)

    return out.reshape(N, C, H, W)


def _reference(x, mean, std, use_clamp_value):
    x = x.astype(jnp.float32)
    if use_clamp_value:
        x = jnp.clip(x, 0.0, 1.0)
    mean = jnp.asarray(mean, jnp.float32)[None, :, None, None]
    std = jnp.asarray(std, jnp.float32)[None, :, None, None]
    return (x - mean) / std


if __name__ == "__main__":
    key = jax.random.PRNGKey(0)
    mean = [0.485, 0.456, 0.406]
    std = [0.229, 0.224, 0.225]

    # Case 1: H*W multiple of 128 (lane-dense (R,128) path).
    # Case 2: H*W NOT multiple of 128 and ragged batch (cdiv grid path).
    test_shapes = [(2, 3, 16, 16), (3, 3, 14, 14)]

    for shape in test_shapes:
        k, key = jax.random.split(key)
        # Inputs slightly outside [0, 1] so the clamp path is exercised.
        x = jax.random.uniform(k, shape, jnp.float32, minval=-0.2, maxval=1.2)
        for use_clamp in (True, False):
            out = imagenet_normalize(x, mean, std, use_clamp)
            out = jax.block_until_ready(out)
            ref = _reference(x, mean, std, use_clamp)
            assert out.shape == shape and out.dtype == jnp.float32
            assert jnp.allclose(out, ref, atol=1e-5, rtol=1e-5), (
                f"mismatch vs reference for shape={shape}, clamp={use_clamp}"
            )

    print("KERNEL_OK")
</pallas_src>

<mosaic_0001>
module attributes {stable_mosaic.version = 11 : i64} {
  func.func @_normalizer_kernel(%arg0: i32, %arg1: memref<3xf32, #tpu.memory_space<smem>>, %arg2: memref<3xf32, #tpu.memory_space<smem>>, %arg3: memref<1x3x2x128xf32, #tpu.memory_space<vmem>>, %arg4: memref<1x3x2x128xf32, #tpu.memory_space<vmem>>) attributes {dimension_semantics = [#tpu.dimension_semantics<parallel>], iteration_bounds = array<i64: 2>, scalar_prefetch = 0 : i64, scratch_operands = 0 : i64, tpu.core_type = #tpu.core_type<tc>, window_params = [{transform_indices = @transform_0, window_bounds = array<i64: 3>}, {transform_indices = @transform_1, window_bounds = array<i64: 3>}, {transform_indices = @transform_2, window_bounds = array<i64: 1, 3, 2, 128>}, {transform_indices = @transform_3, window_bounds = array<i64: 1, 3, 2, 128>}]} {
    %c0 = arith.constant 0 : index
    %c0_0 = arith.constant 0 : index
    %c0_1 = arith.constant 0 : index
    %c0_2 = arith.constant 0 : index
    %0 = vector.load %arg3[%c0, %c0_0, %c0_1, %c0_2] : memref<1x3x2x128xf32, #tpu.memory_space<vmem>>, vector<1x1x2x128xf32>
    %1 = vector.shape_cast %0 : vector<1x1x2x128xf32> to vector<1x2x128xf32>
    %cst = arith.constant 0.000000e+00 : f32
    %cst_3 = arith.constant 1.000000e+00 : f32
    %2 = vector.broadcast %cst : f32 to vector<1x2x128xf32>
    %3 = arith.maximumf %2, %1 : vector<1x2x128xf32>
    %4 = vector.broadcast %cst_3 : f32 to vector<1x2x128xf32>
    %5 = arith.minimumf %4, %3 : vector<1x2x128xf32>
    %c0_4 = arith.constant 0 : index
    %6 = memref.load %arg1[%c0_4] : memref<3xf32, #tpu.memory_space<smem>>
    %7 = vector.broadcast %6 : f32 to vector<1x2x128xf32>
    %8 = arith.mulf %5, %7 : vector<1x2x128xf32>
    %c0_5 = arith.constant 0 : index
    %9 = memref.load %arg2[%c0_5] : memref<3xf32, #tpu.memory_space<smem>>
    %10 = vector.broadcast %9 : f32 to vector<1x2x128xf32>
    %11 = arith.addf %8, %10 : vector<1x2x128xf32>
    %c0_6 = arith.constant 0 : index
    %c0_7 = arith.constant 0 : index
    %c0_8 = arith.constant 0 : index
    %c0_9 = arith.constant 0 : index
    %12 = vector.load %arg4[%c0_6, %c0_7, %c0_8, %c0_9] : memref<1x3x2x128xf32, #tpu.memory_space<vmem>>, vector<1x1x2x128xf32>
    %13 = vector.shape_cast %12 : vector<1x1x2x128xf32> to vector<1x2x128xf32>
    %14 = vector.shape_cast %11 : vector<1x2x128xf32> to vector<1x1x2x128xf32>
    tpu.vector_store %arg4[%c0_6, %c0_7, %c0_8, %c0_9], %14 {strides = array<i32>} : memref<1x3x2x128xf32, #tpu.memory_space<vmem>>, vector<1x1x2x128xf32>,
    %c0_10 = arith.constant 0 : index
    %c1 = arith.constant 1 : index
    %c0_11 = arith.constant 0 : index
    %c0_12 = arith.constant 0 : index
    %15 = vector.load %arg3[%c0_10, %c1, %c0_11, %c0_12] : memref<1x3x2x128xf32, #tpu.memory_space<vmem>>, vector<1x1x2x128xf32>
    %16 = vector.shape_cast %15 : vector<1x1x2x128xf32> to vector<1x2x128xf32>
    %cst_13 = arith.constant 0.000000e+00 : f32
    %cst_14 = arith.constant 1.000000e+00 : f32
    %17 = vector.broadcast %cst_13 : f32 to vector<1x2x128xf32>
    %18 = arith.maximumf %17, %16 : vector<1x2x128xf32>
    %19 = vector.broadcast %cst_14 : f32 to vector<1x2x128xf32>
    %20 = arith.minimumf %19, %18 : vector<1x2x128xf32>
    %c1_15 = arith.constant 1 : index
    %21 = memref.load %arg1[%c1_15] : memref<3xf32, #tpu.memory_space<smem>>
    %22 = vector.broadcast %21 : f32 to vector<1x2x128xf32>
    %23 = arith.mulf %20, %22 : vector<1x2x128xf32>
    %c1_16 = arith.constant 1 : index
    %24 = memref.load %arg2[%c1_16] : memref<3xf32, #tpu.memory_space<smem>>
    %25 = vector.broadcast %24 : f32 to vector<1x2x128xf32>
    %26 = arith.addf %23, %25 : vector<1x2x128xf32>
    %c0_17 = arith.constant 0 : index
    %c1_18 = arith.constant 1 : index
    %c0_19 = arith.constant 0 : index
    %c0_20 = arith.constant 0 : index
    %27 = vector.load %arg4[%c0_17, %c1_18, %c0_19, %c0_20] : memref<1x3x2x128xf32, #tpu.memory_space<vmem>>, vector<1x1x2x128xf32>
    %28 = vector.shape_cast %27 : vector<1x1x2x128xf32> to vector<1x2x128xf32>
    %29 = vector.shape_cast %26 : vector<1x2x128xf32> to vector<1x1x2x128xf32>
    tpu.vector_store %arg4[%c0_17, %c1_18, %c0_19, %c0_20], %29 {strides = array<i32>} : memref<1x3x2x128xf32, #tpu.memory_space<vmem>>, vector<1x1x2x128xf32>,
    %c0_21 = arith.constant 0 : index
    %c2 = arith.constant 2 : index
    %c0_22 = arith.constant 0 : index
    %c0_23 = arith.constant 0 : index
    %30 = vector.load %arg3[%c0_21, %c2, %c0_22, %c0_23] : memref<1x3x2x128xf32, #tpu.memory_space<vmem>>, vector<1x1x2x128xf32>
    %31 = vector.shape_cast %30 : vector<1x1x2x128xf32> to vector<1x2x128xf32>
    %cst_24 = arith.constant 0.000000e+00 : f32
    %cst_25 = arith.constant 1.000000e+00 : f32
    %32 = vector.broadcast %cst_24 : f32 to vector<1x2x128xf32>
    %33 = arith.maximumf %32, %31 : vector<1x2x128xf32>
    %34 = vector.broadcast %cst_25 : f32 to vector<1x2x128xf32>
    %35 = arith.minimumf %34, %33 : vector<1x2x128xf32>
    %c2_26 = arith.constant 2 : index
    %36 = memref.load %arg1[%c2_26] : memref<3xf32, #tpu.memory_space<smem>>
    %37 = vector.broadcast %36 : f32 to vector<1x2x128xf32>
    %38 = arith.mulf %35, %37 : vector<1x2x128xf32>
    %c2_27 = arith.constant 2 : index
    %39 = memref.load %arg2[%c2_27] : memref<3xf32, #tpu.memory_space<smem>>
    %40 = vector.broadcast %39 : f32 to vector<1x2x128xf32>
    %41 = arith.addf %38, %40 : vector<1x2x128xf32>
    %c0_28 = arith.constant 0 : index
    %c2_29 = arith.constant 2 : index
    %c0_30 = arith.constant 0 : index
    %c0_31 = arith.constant 0 : index
    %42 = vector.load %arg4[%c0_28, %c2_29, %c0_30, %c0_31] : memref<1x3x2x128xf32, #tpu.memory_space<vmem>>, vector<1x1x2x128xf32>
    %43 = vector.shape_cast %42 : vector<1x1x2x128xf32> to vector<1x2x128xf32>
    %44 = vector.shape_cast %41 : vector<1x2x128xf32> to vector<1x1x2x128xf32>
    tpu.vector_store %arg4[%c0_28, %c2_29, %c0_30, %c0_31], %44 {strides = array<i32>} : memref<1x3x2x128xf32, #tpu.memory_space<vmem>>, vector<1x1x2x128xf32>,
    return
  }
  func.func @transform_0(%arg0: i32) -> i32 {
    %c0_i32 = arith.constant 0 : i32
    %c0_i32_0 = arith.constant 0 : i32
    return %c0_i32 : i32
  }
  func.func @transform_1(%arg0: i32) -> i32 {
    %c0_i32 = arith.constant 0 : i32
    %c0_i32_0 = arith.constant 0 : i32
    return %c0_i32 : i32
  }
  func.func @transform_2(%arg0: i32) -> (i32, i32, i32, i32) {
    %c0_i32 = arith.constant 0 : i32
    %c0_i32_0 = arith.constant 0 : i32
    %c0_i32_1 = arith.constant 0 : i32
    %c0_i32_2 = arith.constant 0 : i32
    return %arg0, %c0_i32, %c0_i32_0, %c0_i32_1 : i32, i32, i32, i32
  }
  func.func @transform_3(%arg0: i32) -> (i32, i32, i32, i32) {
    %c0_i32 = arith.constant 0 : i32
    %c0_i32_0 = arith.constant 0 : i32
    %c0_i32_1 = arith.constant 0 : i32
    %c0_i32_2 = arith.constant 0 : i32
    return %arg0, %c0_i32, %c0_i32_0, %c0_i32_1 : i32, i32, i32, i32
  }
}

</mosaic_0001>

<llo_original>
// kernel: tpu_custom_call.1
$region0: #{tpu_custom_call.1}
  #allocation0 [shape = 'u32[]', space=smem, size = 0x4, offset = 0x4, fixed_abs, tag = 'smem constant byte address 0x4 - core index']
  #allocation1 [shape = 'u32[144,128]{1,0:T(1,128)}', space=vmem, size = 0x12000, scoped, tag = 'internal scratch']
  %s0 = inlined_call_operand.hbm [shape: f32[3], index: 0, kind: input, shape index: {}]
  %s1 = inlined_call_operand.vmem [shape: f32[3], index: 1, kind: input, shape index: {}]
  %s2 = inlined_call_operand.hbm [shape: f32[2,3,2,128], index: 2, kind: input, shape index: {}]
  %s3 = inlined_call_operand.hbm [shape: f32[2,3,2,128], index: 3, kind: output, shape index: {}]
  %s4 = sld [smem:[#allocation0]]
  $region57: #{tpu_custom_call.1} parent=0
    _
  %s6 = ssub.s32 1, %s4
  %s7 = scalar_select 0, %s6, %s4
  $region1: #{tpu_custom_call.1} parent=0
    #allocation2 [shape = 'u8[512]{0}', space=smem, size = 0x200, scoped, tag = 'input window, operand 0, single buffered']
    #allocation3 [shape = 's32[2]{0}', space=sflag, size = 0x8, scoped, tag = 'scoped memory for tpu_custom_call.1']
    #allocation4 [shape = 's32[2]{0}', space=sflag, size = 0x8, scoped, tag = 'scoped memory for tpu_custom_call.1']
    #allocation5 [shape = 's32[2]{0}', space=sflag, size = 0x8, scoped, tag = 'scoped memory for tpu_custom_call.1']
    #allocation6 [shape = 's32[2]{0}', space=sflag, size = 0x8, scoped, tag = 'scoped memory for tpu_custom_call.1']
    #allocation7 [shape = 'u8[512]{0}', space=smem, size = 0x200, scoped, tag = 'input window, operand 1, single buffered']
    #allocation8 [shape = 'u8[6144]{0}', space=vmem, size = 0x1800, scoped, tag = 'input window, operand 2']
    #allocation9 [shape = 'u8[6144]{0}', space=vmem, size = 0x1800, scoped, tag = 'output window, operand 0']
    %8 = vsyncpa [#allocation5], 0
    %9 = vsyncpa [#allocation6], 0
    %10 = vsyncpa [#allocation3], 0
    %s11 = scalar_lea.sflag [#allocation3], 1
    %12 = vsyncpa %s11, 0
    %13 = vsyncpa [#allocation4], 0
    %s14 = scalar_lea.sflag [#allocation4], 1
    %15 = vsyncpa %s14, 0
    loop: start=0, step=1, limit=4
    $region2: #{tpu_custom_call.1} parent=1 // loop_pre_header
      _
    $region3: #{tpu_custom_call.1} parent=1 // loop_header
      %s17 = sphi 0, %s21
      %p18 = scmp.ge.s32.totalorder %s17, 4
      %s25 = sphi 0, %s25
      %s27 = sphi 0, %s25
      %s28 = sphi 0, %s27
      %s42 = sphi 0, %s28
      %s46 = sphi 0, %s46
      %s48 = sphi 0, %s46
      %s49 = sphi 0, %s48
      %s63 = sphi 0, %s49
      %s69 = sphi 0, %s71
      %s72 = sphi 0, %s69
      %s73 = sphi 0, %s72
      %s89 = sphi 0, %s73
      %s95 = sphi 0, %s97
      %s98 = sphi 0, %s95
      %s99 = sphi 0, %s98
      %s115 = sphi 0, %s99
    $region4: #{tpu_custom_call.1} parent=1 // loop_header_branch
      %20 = sbr.rel (%p18) target = $region8
    $region5: #{tpu_custom_call.1} parent=1 // loop_body
      %s22 = ssub.s32 %s17, 1
      %s23 = ssub.s32 %s17, 2
      %s24 = sadd.s32 %s17, 1
      %s26 = sadd.s32 %s25, 1
      %p29 = scmp.eq.s32.totalorder %s17, 1
      %p30 = scmp.ne.s32.totalorder %s25, %s27
      %p31 = scmp.eq.s32.totalorder %s17, 0
      %p32 = por %p30, %p31
      %p33 = scmp.ne.s32.totalorder %s25, %s27
      %p34 = scmp.eq.s32.totalorder %s22, 1
      %p35 = por %p33, %p34
      %p36 = scmp.ne.s32.totalorder %s27, %s28
      %p37 = scmp.eq.s32.totalorder %s22, 0
      %p38 = por %p36, %p37
      %p39 = scmp.ne.s32.totalorder %s27, %s28
      %p40 = scmp.eq.s32.totalorder %s23, 1
      %p41 = por %p39, %p40
      %p43 = scmp.ne.s32.totalorder %s28, %s42
      %p44 = scmp.eq.s32.totalorder %s23, 0
      %p45 = por %p43, %p44
      %s47 = sadd.s32 %s46, 1
      %p50 = scmp.eq.s32.totalorder %s17, 1
      %p51 = scmp.ne.s32.totalorder %s46, %s48
      %p52 = scmp.eq.s32.totalorder %s17, 0
      %p53 = por %p51, %p52
      %p54 = scmp.ne.s32.totalorder %s46, %s48
      %p55 = scmp.eq.s32.totalorder %s22, 1
      %p56 = por %p54, %p55
      %p57 = scmp.ne.s32.totalorder %s48, %s49
      %p58 = scmp.eq.s32.totalorder %s22, 0
      %p59 = por %p57, %p58
      %p60 = scmp.ne.s32.totalorder %s48, %s49
      %p61 = scmp.eq.s32.totalorder %s23, 1
      %p62 = por %p60, %p61
      %p64 = scmp.ne.s32.totalorder %s49, %s63
      %p65 = scmp.eq.s32.totalorder %s23, 0
      %p66 = por %p64, %p65
      %s67 = ssub.s32 %s17, %s24
      %p68 = scmp.eq.s32.totalorder %s67, 0
      %s70 = sadd.s32 %s69, 1
      %s71 = scalar_select %p68, %s69, %s70
      %p74 = pneg %p68
      %p75 = scmp.eq.s32.totalorder %s17, 1
      %p76 = por %p74, %p75
      %p77 = scmp.ne.s32.totalorder %s69, %s72
      %p78 = scmp.eq.s32.totalorder %s17, 0
      %p79 = por %p77, %p78
      %p80 = scmp.ne.s32.totalorder %s69, %s72
      %p81 = scmp.eq.s32.totalorder %s22, 1
      %p82 = por %p80, %p81
      %p83 = scmp.ne.s32.totalorder %s72, %s73
      %p84 = scmp.eq.s32.totalorder %s22, 0
      %p85 = por %p83, %p84
      %p86 = scmp.ne.s32.totalorder %s72, %s73
      %p87 = scmp.eq.s32.totalorder %s23, 1
      %p88 = por %p86, %p87
      %p90 = scmp.ne.s32.totalorder %s73, %s89
      %p91 = scmp.eq.s32.totalorder %s23, 0
      %p92 = por %p90, %p91
      %s93 = ssub.s32 %s17, %s24
      %p94 = scmp.eq.s32.totalorder %s93, 0
      %s96 = sadd.s32 %s95, 1
      %s97 = scalar_select %p94, %s95, %s96
      %p100 = pneg %p94
      %p101 = scmp.eq.s32.totalorder %s17, 1
      %p102 = por %p100, %p101
      %p103 = scmp.ne.s32.totalorder %s95, %s98
      %p104 = scmp.eq.s32.totalorder %s17, 0
      %p105 = por %p103, %p104
      %p106 = scmp.ne.s32.totalorder %s95, %s98
      %p107 = scmp.eq.s32.totalorder %s22, 1
      %p108 = por %p106, %p107
      %p109 = scmp.ne.s32.totalorder %s98, %s99
      %p110 = scmp.eq.s32.totalorder %s22, 0
      %p111 = por %p109, %p110
      %p112 = scmp.ne.s32.totalorder %s98, %s99
      %p113 = scmp.eq.s32.totalorder %s23, 1
      %p114 = por %p112, %p113
      %p116 = scmp.ne.s32.totalorder %s99, %s115
      %p117 = scmp.eq.s32.totalorder %s23, 0
      %p118 = por %p116, %p117
      %p119 = scmp.le.s32.totalorder 1, %s17
      %p120 = scmp.lt.s32.totalorder %s17, 3
      %p121 = pnand %p119, %p120
      %p122 = pneg %p121
      // Predicated region
      $region9: #{tpu_custom_call.1} parent=5 // pred_check
        _
      $region10: #{tpu_custom_call.1} parent=5 // pred_check_branch
        %124 = sbr.rel (%p121) target = $region12
      $region11: #{tpu_custom_call.1} parent=5 // pred_region
        %s125 = ssub.s32 %s17, 1
        // Predicated region
        $region13: #{tpu_custom_call.1} parent=11 // pred_check
          %p126 = pneg %p38
        $region14: #{tpu_custom_call.1} parent=11 // pred_check_branch
          %128 = sbr.rel (%p126) target = $region16
        $region15: #{tpu_custom_call.1} parent=11 // pred_region
          %s130 = ssub.s32 16, 16
          %131 = vsyncadd [#allocation5], %s130
          %134 = dma.hbm_to_smem %s0, 16, [#allocation2], [#allocation5]
        $region16: #{tpu_custom_call.1} parent=11 // pred_fallthru
          _
        // Predicated region
        $region17: #{tpu_custom_call.1} parent=11 // pred_check
          %p135 = pneg %p59
        $region18: #{tpu_custom_call.1} parent=11 // pred_check_branch
          %137 = sbr.rel (%p135) target = $region20
        $region19: #{tpu_custom_call.1} parent=11 // pred_region
          %s139 = ssub.s32 16, 16
          %140 = vsyncadd [#allocation6], %s139
          %s142 = sshll.u32 %s1, 4
          %s143 = int_to_ptr.vmem [resolvable:$true] %s142
          %145 = dma.vmem_to_smem %s143, 16, [#allocation7], [#allocation6]
        $region20: #{tpu_custom_call.1} parent=11 // pred_fallthru
          _
      $region12: #{tpu_custom_call.1} parent=5 // pred_fallthru
        _
      %p146 = scmp.lt.s32.totalorder %s17, 2
      // Predicated region
      $region21: #{tpu_custom_call.1} parent=5 // pred_check
        %p147 = pneg %p146
      $region22: #{tpu_custom_call.1} parent=5 // pred_check_branch
        %149 = sbr.rel (%p147) target = $region24
      $region23: #{tpu_custom_call.1} parent=5 // pred_region
        // Predicated region
        $region25: #{tpu_custom_call.1} parent=23 // pred_check
          %p150 = pneg %p79
        $region26: #{tpu_custom_call.1} parent=23 // pred_check_branch
          %152 = sbr.rel (%p150) target = $region28
        $region27: #{tpu_custom_call.1} parent=23 // pred_region
          %s153 = sand.u32 %s69, 1
          %s154 = scalar_lea.sflag [#allocation3], %s153
          %s155 = sand.u32 %s69, 1
          %s156 = smul.addr %s155, 6
          %s157 = scalar_lea.vmem [#allocation8], %s156
          %s159 = ssub.s32 96, 96
          %160 = vsyncadd %s154, %s159
          %s161 = smul.addr %s17, 3
          %s162 = smul.addr %s161, 32
          %s163 = scalar_lea.hbm %s2, %s162
          %s164 = sshll.u32 %s157, 4
          %s165 = int_to_ptr.vmem [resolvable:$true] %s164
          %170 = dma.hbm_to_vmem [thread:$0]  %s163, 96, %s165, %s154, 32, 32, 2
        $region28: #{tpu_custom_call.1} parent=23 // pred_fallthru
          _
      $region24: #{tpu_custom_call.1} parent=5 // pred_fallthru
        _
      %p171 = scmp.le.s32.totalorder 1, %s17
      %p172 = scmp.lt.s32.totalorder %s17, 3
      %p173 = pnand %p171, %p172
      %p174 = pneg %p173
      // Predicated region
      $region29: #{tpu_custom_call.1} parent=5 // pred_check
        _
      $region30: #{tpu_custom_call.1} parent=5 // pred_check_branch
        %176 = sbr.rel (%p173) target = $region32
      $region31: #{tpu_custom_call.1} parent=5 // pred_region
        %s177 = ssub.s32 %s17, 1
        // Predicated region
        $region33: #{tpu_custom_call.1} parent=31 // pred_check
          %p178 = pneg %p38
        $region34: #{tpu_custom_call.1} parent=31 // pred_check_branch
          %180 = sbr.rel (%p178) target = $region36
        $region35: #{tpu_custom_call.1} parent=31 // pred_region
          %181 = dma.done [#allocation5], 16
        $region36: #{tpu_custom_call.1} parent=31 // pred_fallthru
          _
        // Predicated region
        $region37: #{tpu_custom_call.1} parent=31 // pred_check
          %p182 = pneg %p59
        $region38: #{tpu_custom_call.1} parent=31 // pred_check_branch
          %184 = sbr.rel (%p182) target = $region40
        $region39: #{tpu_custom_call.1} parent=31 // pred_region
          %185 = dma.done [#allocation6], 16
        $region40: #{tpu_custom_call.1} parent=31 // pred_fallthru
          _
        %s186 = sand.u32 %s72, 1
        %s187 = scalar_lea.sflag [#allocation3], %s186
        %s188 = sand.u32 %s72, 1
        %s189 = smul.addr %s188, 6
        %s190 = scalar_lea.vmem [#allocation8], %s189
        // Predicated region
        $region41: #{tpu_custom_call.1} parent=31 // pred_check
          %p191 = pneg %p85
        $region42: #{tpu_custom_call.1} parent=31 // pred_check_branch
          %193 = sbr.rel (%p191) target = $region44
        $region43: #{tpu_custom_call.1} parent=31 // pred_region
          %194 = dma.done %s187, 96
        $region44: #{tpu_custom_call.1} parent=31 // pred_fallthru
          _
        %195 = sfence
        %p196 = pneg %p38
        %p197 = pneg %p35
        %p198 = pneg %p59
        %p199 = pneg %p56
        %s200 = sand.u32 %s72, 1
        %s201 = scalar_lea.sflag [#allocation3], %s200
        %s202 = sand.u32 %s72, 1
        %s203 = smul.addr %s202, 6
        %s204 = scalar_lea.vmem [#allocation8], %s203
        %p205 = pneg %p85
        %p206 = pneg %p82
        %p207 = pneg %p111
        %p208 = pneg %p108
        %s209 = sand.u32 %s98, 1
        %s210 = scalar_lea.sflag [#allocation4], %s209
        %s211 = sand.u32 %s98, 1
        %s212 = smul.addr %s211, 6
        %s213 = scalar_lea.vmem [#allocation9], %s212
        %v214 = vld [vmem:[%s190] sm:$0x3]
        %v215 = vmax.f32 %v214, 0.0
        %v216 = vmin.f32 %v215, 1.0
        %s217 = sld [smem:[#allocation2]]
        %v218 = vstv %s217
        %v219 = vmul.f32 %v216, %v218
        %s220 = sld [smem:[#allocation7]]
        %v221 = vstv %s220
        %v222 = vadd.f32 %v219, %v221
        %223 = vst [vmem:[%s213] sm:$0x3] %v222
        %s224 = scalar_lea.vmem %s190, 2 [#allocation8]
        %v225 = vld [vmem:[%s224] sm:$0x3]
        %v226 = vmax.f32 %v225, 0.0
        %v227 = vmin.f32 %v226, 1.0
        %s228 = sld [smem:[#allocation2 + $0x1]]
        %v229 = vstv %s228
        %v230 = vmul.f32 %v227, %v229
        %s231 = sld [smem:[#allocation7 + $0x1]]
        %v232 = vstv %s231
        %v233 = vadd.f32 %v230, %v232
        %s234 = scalar_lea.vmem %s213, 2 [#allocation9]
        %235 = vst [vmem:[%s234] sm:$0x3] %v233
        %s236 = scalar_lea.vmem %s190, 4 [#allocation8]
        %v237 = vld [vmem:[%s236] sm:$0x3]
        %v238 = vmax.f32 %v237, 0.0
        %v239 = vmin.f32 %v238, 1.0
        %s240 = sld [smem:[#allocation2 + $0x2]]
        %v241 = vstv %s240
        %v242 = vmul.f32 %v239, %v241
        %s243 = sld [smem:[#allocation7 + $0x2]]
        %v244 = vstv %s243
        %v245 = vadd.f32 %v242, %v244
        %s246 = scalar_lea.vmem %s213, 4 [#allocation9]
        %247 = vst [vmem:[%s246] sm:$0x3] %v245
        %s248 = sand.u32 %s98, 1
        %s249 = scalar_lea.sflag [#allocation4], %s248
        %s250 = sand.u32 %s98, 1
        %s251 = smul.addr %s250, 6
        %s252 = scalar_lea.vmem [#allocation9], %s251
        // Predicated region
        $region45: #{tpu_custom_call.1} parent=31 // pred_check
          %p253 = pneg %p108
        $region46: #{tpu_custom_call.1} parent=31 // pred_check_branch
          %255 = sbr.rel (%p253) target = $region48
        $region47: #{tpu_custom_call.1} parent=31 // pred_region
          %s257 = ssub.s32 96, 96
          %258 = vsyncadd %s249, %s257
          %s259 = smul.addr %s22, 3
          %s260 = smul.addr %s259, 32
          %s261 = scalar_lea.hbm %s3, %s260
          %s262 = sshll.u32 %s252, 4
          %s263 = int_to_ptr.vmem [resolvable:$true] %s262
          %268 = dma.vmem_to_hbm [thread:$0]  %s263, 96, %s261, %s249, 32, 32, 2
        $region48: #{tpu_custom_call.1} parent=31 // pred_fallthru
          _
      $region32: #{tpu_custom_call.1} parent=5 // pred_fallthru
        _
      %p269 = scmp.le.s32.totalorder 2, %s17
      // Predicated region
      $region49: #{tpu_custom_call.1} parent=5 // pred_check
        %p270 = pneg %p269
      $region50: #{tpu_custom_call.1} parent=5 // pred_check_branch
        %272 = sbr.rel (%p270) target = $region52
      $region51: #{tpu_custom_call.1} parent=5 // pred_region
        %s273 = ssub.s32 %s17, 2
        // Predicated region
        $region53: #{tpu_custom_call.1} parent=51 // pred_check
          %p274 = pneg %p114
        $region54: #{tpu_custom_call.1} parent=51 // pred_check_branch
          %276 = sbr.rel (%p274) target = $region56
        $region55: #{tpu_custom_call.1} parent=51 // pred_region
          %s277 = sand.u32 %s99, 1
          %s278 = scalar_lea.sflag [#allocation4], %s277
          %s279 = sand.u32 %s99, 1
          %s280 = smul.addr %s279, 6
          %s281 = scalar_lea.vmem [#allocation9], %s280
          %282 = dma.done %s278, 96
        $region56: #{tpu_custom_call.1} parent=51 // pred_fallthru
          _
      $region52: #{tpu_custom_call.1} parent=5 // pred_fallthru
        _
    $region6: #{tpu_custom_call.1} parent=1 // loop_footer
      %s21 = sadd.s32 1, %s17
    $region7: #{tpu_custom_call.1} parent=1 // loop_footer_branch
      %16 = sbr.rel target = $region3
    $region8: #{tpu_custom_call.1} parent=1 // loop_exit
      _
    %283 = vsyncpa [#allocation3], 1
    %s284 = scalar_lea.sflag [#allocation3], 1
    %285 = vsyncpa %s284, 1
    %286 = vsyncpa [#allocation4], 1
    %s287 = scalar_lea.sflag [#allocation4], 1
    %288 = vsyncpa %s287, 1
    %289 = vsyncpa [#allocation5], 1
    %s290 = scalar_lea.sflag [#allocation5], 1
    %291 = vsyncpa %s290, 1
    %292 = vsyncpa [#allocation6], 1
    %s293 = scalar_lea.sflag [#allocation6], 1
    %294 = vsyncpa %s293, 1

</llo_original>
